<compile_context>
chip_gen: v7x
topology: tpu7x:2x2x1
jax: 0.10.0
libtpu: 0.0.40
codegen_flags: <defaults>
</compile_context>

<pallas_src>
import jax
import jax.numpy as jnp
from jax.experimental import pallas as pl
from jax.experimental.pallas import tpu as pltpu

FEATURES = 446  # fixed by the module: nn.Linear(446, 1)


def _attention_weights_kernel(x_ref, w_ref, o_ref):
    """One grid step handles TB batch elements.

    x_ref: (TB, S, F)  input features (any float dtype)
    w_ref: (1, F)      linear weight as a lane-dense f32 row
    o_ref: (TB, S)     softmax(attention scores) over the S axis, f32
    """
    x = x_ref[...].astype(jnp.float32)               # (TB, S, F), f32 MAC
    w = w_ref[...]                                    # (1, F) f32, broadcasts

    # Linear(446, 1) without bias: VPU multiply + XLU lane reduce over F.
    # (The scalar bias cancels exactly under softmax, so it is omitted.)
    scores = jnp.sum(x * w, axis=-1)                  # (TB, S)

    # Numerically stable softmax over the sequence axis (last axis here).
    m = jnp.max(scores, axis=-1, keepdims=True)       # (TB, 1)
    e = jnp.exp(scores - m)                           # (TB, S)
    denom = jnp.sum(e, axis=-1, keepdims=True)        # (TB, 1)

    # EUP approximate reciprocal + one Newton-Raphson step (cheap VPU filler)
    # => effectively exact 1/denom without a VPU divide.
    inv = pl.reciprocal(denom, approx=True)
    inv = inv * (2.0 - denom * inv)

    o_ref[...] = (e * inv).astype(o_ref.dtype)


def _vmem_capacity_bytes(default=64 << 20):
    """Generation-aware VMEM capacity; falls back to the smallest (v7x)."""
    try:
        info = pltpu.get_tpu_info()
        cap = getattr(info, "vmem_capacity_bytes", None)
        if cap:
            return int(cap)
    except Exception:
        pass
    return default


def attention_weights(lstm_output, weight, bias=None, *, vmem_budget_bytes=None):
    """lstm_output: (B, S, 446); weight: (1, 446); bias: (1,) -> (B, S, 1) f32.

    `bias` is accepted for API parity with nn.Linear(446, 1) but is unused:
    softmax(x + c) == softmax(x) for a scalar c, so the result is unchanged.
    `vmem_budget_bytes` optionally overrides the per-step VMEM budget (tests).
    """
    B, S, F = lstm_output.shape
    assert F == FEATURES
    del bias  # mathematically a no-op for the softmax output

    w_row = weight.reshape(1, F).astype(jnp.float32)  # lane-dense f32 weight row

    # ---- VMEM policy -------------------------------------------------------
    cap = _vmem_capacity_bytes()                      # 128 MiB v5e/v6e, 64 MiB v7x
    vmem_limit = int(min(cap * 3 // 4, 96 << 20))     # 96 MiB v5e/v6e, 48 MiB v7x
    if vmem_budget_bytes is None:
        target_total = vmem_limit - (8 << 20)         # headroom for output/misc
    else:
        target_total = int(vmem_budget_bytes)

    # Per batch row, per grid step:
    #   2 x input tile (double-buffered pipeline)   : S * f_padded * itemsize * 2
    #   ~2 x f32 compute temporaries (cast, product): S * f_padded * 4 * 2
    # (last dim pads to a multiple of 128 lanes: 446 -> 512)
    itemsize = jnp.dtype(lstm_output.dtype).itemsize
    f_padded = ((F + 127) // 128) * 128
    per_batch_bytes = S * f_padded * 2 * (itemsize + 4)
    tb_budget = max(1, target_total // per_batch_bytes)

    # ---- batch-tile size ---------------------------------------------------
    if B <= tb_budget:
        if B >= 16:
            # Whole batch fits, but split into >= 2 grid steps so both of
            # v7x's TensorCores get work (no cost on single-TC v5e/v6e).
            TB = max(8, min(tb_budget, 8 * pl.cdiv(pl.cdiv(B, 2), 8)))
            TB = min(TB, (B // 8) * 8)
        else:
            TB = B                                    # one block == full batch
    else:
        # Keep the output block 8-aligned on the sublane axis whenever TB < B.
        TB = max(8, (min(tb_budget, B) // 8) * 8)
    grid = (pl.cdiv(B, TB),)

    cost = pl.CostEstimate(
        flops=2 * B * S * F,
        transcendentals=B * S,
        bytes_accessed=B * S * F * itemsize + B * S * 4 + F * 4,
    )

    out2d = pl.pallas_call(
        _attention_weights_kernel,
        out_shape=jax.ShapeDtypeStruct((B, S), jnp.float32),
        grid_spec=pltpu.PrefetchScalarGridSpec(
            num_scalar_prefetch=0,
            grid=grid,
            in_specs=[
                # (TB, S, F): last two dims equal the full array dims, so the
                # (8, 128) divisibility rule does not constrain them.
                pl.BlockSpec((TB, S, F), lambda b: (b, 0, 0)),
                pl.BlockSpec((1, F), lambda b: (0, 0)),
            ],
            out_specs=pl.BlockSpec((TB, S), lambda b: (b, 0)),
        ),
        compiler_params=pltpu.CompilerParams(
            dimension_semantics=("parallel",),
            vmem_limit_bytes=vmem_limit,
        ),
        cost_estimate=cost,
    )(lstm_output, w_row)

    # Restore the module's (B, S, 1) output shape — free layout plumbing.
    return out2d.reshape(B, S, 1)


def _reference(lstm_output, weight, bias):
    scores = jnp.einsum("bsf,of->bso", lstm_output.astype(jnp.float32),
                        weight.astype(jnp.float32)) + bias  # (B, S, 1)
    return jax.nn.softmax(scores, axis=1)


if __name__ == "__main__":
    key = jax.random.PRNGKey(0)
    k_x, k_w, k_b, k_x2 = jax.random.split(key, 4)

    # Deterministic synthetic parameters (same shapes as nn.Linear(446, 1)).
    bound = 1.0 / (FEATURES ** 0.5)
    weight = jax.random.uniform(k_w, (1, FEATURES), jnp.float32, -bound, bound)
    bias = jax.random.uniform(k_b, (1,), jnp.float32, -bound, bound)

    # Small case: whole batch in one block (TB == B, B < 16).
    B, S = 4, 8
    lstm_output = jax.random.normal(k_x, (B, S, FEATURES), jnp.float32)
    out = jax.block_until_ready(attention_weights(lstm_output, weight, bias))
    ref = _reference(lstm_output, weight, bias)
    assert out.shape == (B, S, 1)
    assert jnp.allclose(out, ref, atol=1e-4, rtol=1e-4)

    # Larger case exercising a multi-step batch-tiled grid: a tight budget
    # forces TB=8 (6 grid steps) and the remainder-free tiling path.
    B2 = 48
    x2 = jax.random.normal(k_x2, (B2, S, FEATURES), jnp.float32)
    small_budget = 8 * S * 512 * 2 * (4 + 4)  # per_batch_bytes * 8 -> TB=8
    out2 = jax.block_until_ready(
        attention_weights(x2, weight, bias, vmem_budget_bytes=small_budget))
    ref2 = _reference(x2, weight, bias)
    assert out2.shape == (B2, S, 1)
    assert jnp.allclose(out2, ref2, atol=1e-4, rtol=1e-4)

    # Default-budget case with B >= 16: verifies the >=2-step split for v7x.
    out3 = jax.block_until_ready(attention_weights(x2, weight, bias))
    assert out3.shape == (B2, S, 1)
    assert jnp.allclose(out3, ref2, atol=1e-4, rtol=1e-4)

    print("KERNEL_OK")
</pallas_src>

<mosaic_0001>
module attributes {stable_mosaic.version = 11 : i64} {
  func.func @_attention_weights_kernel(%arg0: i32, %arg1: memref<4x8x446xf32, #tpu.memory_space<vmem>>, %arg2: memref<1x446xf32, #tpu.memory_space<vmem>>, %arg3: memref<4x8xf32, #tpu.memory_space<vmem>>) attributes {dimension_semantics = [#tpu.dimension_semantics<parallel>], iteration_bounds = array<i64: 1>, scalar_prefetch = 0 : i64, scratch_operands = 0 : i64, tpu.core_type = #tpu.core_type<tc>, window_params = [{transform_indices = @transform_0, window_bounds = array<i64: 4, 8, 446>}, {pipeline_mode = #tpu.pipeline_mode<synchronous>, transform_indices = @transform_1, window_bounds = array<i64: 1, 446>}, {transform_indices = @transform_2, window_bounds = array<i64: 4, 8>}]} {
    %c0 = arith.constant 0 : index
    %c0_0 = arith.constant 0 : index
    %c0_1 = arith.constant 0 : index
    %0 = vector.load %arg1[%c0, %c0_0, %c0_1] : memref<4x8x446xf32, #tpu.memory_space<vmem>>, vector<4x8x446xf32>
    %c0_2 = arith.constant 0 : index
    %c0_3 = arith.constant 0 : index
    %1 = vector.load %arg2[%c0_2, %c0_3] : memref<1x446xf32, #tpu.memory_space<vmem>>, vector<1x446xf32>
    %2 = vector.shape_cast %1 : vector<1x446xf32> to vector<1x1x446xf32>
    %3 = vector.broadcast %2 : vector<1x1x446xf32> to vector<4x8x446xf32>
    %4 = arith.mulf %0, %3 : vector<4x8x446xf32>
    %cst = arith.constant dense<0.000000e+00> : vector<4x8xf32>
    %5 = vector.multi_reduction <add>, %4, %cst [2] : vector<4x8x446xf32> to vector<4x8xf32>
    %cst_4 = arith.constant dense<0xFF800000> : vector<4xf32>
    %6 = vector.multi_reduction <maximumf>, %5, %cst_4 [1] : vector<4x8xf32> to vector<4xf32>
    %7 = vector.shape_cast %6 : vector<4xf32> to vector<4x1xf32>
    %8 = vector.broadcast %7 : vector<4x1xf32> to vector<4x8xf32>
    %9 = arith.subf %5, %8 : vector<4x8xf32>
    %10 = math.exp %9 : vector<4x8xf32>
    %cst_5 = arith.constant dense<0.000000e+00> : vector<4xf32>
    %11 = vector.multi_reduction <add>, %10, %cst_5 [1] : vector<4x8xf32> to vector<4xf32>
    %12 = vector.shape_cast %11 : vector<4xf32> to vector<4x1xf32>
    %13 = tpu.reciprocal %12 {approx = true} : vector<4x1xf32> -> vector<4x1xf32>
    %14 = arith.mulf %12, %13 : vector<4x1xf32>
    %cst_6 = arith.constant 2.000000e+00 : f32
    %15 = vector.broadcast %cst_6 : f32 to vector<4x1xf32>
    %16 = arith.subf %15, %14 : vector<4x1xf32>
    %17 = arith.mulf %13, %16 : vector<4x1xf32>
    %18 = vector.broadcast %17 : vector<4x1xf32> to vector<4x8xf32>
    %19 = arith.mulf %10, %18 : vector<4x8xf32>
    %c0_7 = arith.constant 0 : index
    %c0_8 = arith.constant 0 : index
    %20 = vector.load %arg3[%c0_7, %c0_8] : memref<4x8xf32, #tpu.memory_space<vmem>>, vector<4x8xf32>
    tpu.vector_store %arg3[%c0_7, %c0_8], %19 {strides = array<i32>} : memref<4x8xf32, #tpu.memory_space<vmem>>, vector<4x8xf32>,
    return
  }
  func.func @transform_0(%arg0: i32) -> (i32, i32, i32) {
    %c0_i32 = arith.constant 0 : i32
    %c0_i32_0 = arith.constant 0 : i32
    %c0_i32_1 = arith.constant 0 : i32
    return %arg0, %c0_i32, %c0_i32_0 : i32, i32, i32
  }
  func.func @transform_1(%arg0: i32) -> (i32, i32) {
    %c0_i32 = arith.constant 0 : i32
    %c0_i32_0 = arith.constant 0 : i32
    %c0_i32_1 = arith.constant 0 : i32
    return %c0_i32, %c0_i32_0 : i32, i32
  }
  func.func @transform_2(%arg0: i32) -> (i32, i32) {
    %c0_i32 = arith.constant 0 : i32
    %c0_i32_0 = arith.constant 0 : i32
    return %arg0, %c0_i32 : i32, i32
  }
}

</mosaic_0001>

<llo_original>
// kernel: tpu_custom_call.1
$region0: #{tpu_custom_call.1}
  #allocation0 [shape = 'u32[]', space=smem, size = 0x4, offset = 0x4, fixed_abs, tag = 'smem constant byte address 0x4 - core index']
  #allocation1 [shape = 'u32[144,128]{1,0:T(1,128)}', space=vmem, size = 0x12000, scoped, tag = 'internal scratch']
  %s0 = inlined_call_operand.hbm [shape: f32[4,8,446], index: 0, kind: input, shape index: {}]
  %s1 = inlined_call_operand.hbm [shape: f32[1,446], index: 1, kind: input, shape index: {}]
  %s2 = inlined_call_operand.hbm [shape: f32[4,8], index: 2, kind: output, shape index: {}]
  %s3 = sld [smem:[#allocation0]]
  $region26: #{tpu_custom_call.1} parent=0
    _
  %s5 = ssub.s32 1, %s3
  %s6 = scalar_select 0, %s5, %s3
  $region1: #{tpu_custom_call.1} parent=0
    #allocation2 [shape = 'u8[65536]{0}', space=vmem, size = 0x10000, scoped, tag = 'input window, operand 0, single buffered']
    #allocation3 [shape = 's32[1]{0}', space=sflag, size = 0x4, scoped, tag = 'scoped memory for tpu_custom_call.1']
    #allocation4 [shape = 's32[1]{0}', space=sflag, size = 0x4, scoped, tag = 'scoped memory for tpu_custom_call.1']
    #allocation5 [shape = 'u8[2048]{0}', space=vmem, size = 0x800, scoped, tag = 'input window, operand 1, single buffered']
    #allocation6 [shape = 's32[1]{0}', space=sflag, size = 0x4, scoped, tag = 'scoped memory for tpu_custom_call.1']
    #allocation7 [shape = 'u8[2048]{0}', space=vmem, size = 0x800, scoped, tag = 'output window, operand 0, single buffered']
    %7 = vsyncpa [#allocation3], 0
    %8 = vsyncpa [#allocation6], 0
    %9 = vsyncpa [#allocation4], 0
    // Predicated region
    $region2: #{tpu_custom_call.1} parent=1 // pred_check
      _
    $region3: #{tpu_custom_call.1} parent=1 // pred_check_branch
      %11 = sbr.rel (0) target = $region5
    $region4: #{tpu_custom_call.1} parent=1 // pred_region
      %s13 = ssub.s32 2048, 2048
      %14 = vsyncadd [#allocation3], %s13
      %s15 = sshll.u32 [#allocation2], 4
      %s16 = int_to_ptr.vmem [resolvable:$true] %s15
      %21 = dma.hbm_to_vmem [thread:$0]  %s0, 2048, %s16, [#allocation3], 512, 512, 32
    $region5: #{tpu_custom_call.1} parent=1 // pred_fallthru
      _
    // Predicated region
    $region6: #{tpu_custom_call.1} parent=1 // pred_check
      _
    $region7: #{tpu_custom_call.1} parent=1 // pred_check_branch
      %23 = sbr.rel (0) target = $region9
    $region8: #{tpu_custom_call.1} parent=1 // pred_region
      %s25 = ssub.s32 64, 64
      %26 = vsyncadd [#allocation6], %s25
      %s28 = sshll.u32 [#allocation5], 4
      %s29 = int_to_ptr.vmem [resolvable:$true] %s28
      %31 = dma.hbm_to_vmem [thread:$0]  %s1, 64, %s29, [#allocation6]
    $region9: #{tpu_custom_call.1} parent=1 // pred_fallthru
      _
    // Predicated region
    $region10: #{tpu_custom_call.1} parent=1 // pred_check
      _
    $region11: #{tpu_custom_call.1} parent=1 // pred_check_branch
      %33 = sbr.rel (0) target = $region13
    $region12: #{tpu_custom_call.1} parent=1 // pred_region
      %34 = dma.done [#allocation3], 2048
    $region13: #{tpu_custom_call.1} parent=1 // pred_fallthru
      _
    // Predicated region
    $region14: #{tpu_custom_call.1} parent=1 // pred_check
      _
    $region15: #{tpu_custom_call.1} parent=1 // pred_check_branch
      %36 = sbr.rel (0) target = $region17
    $region16: #{tpu_custom_call.1} parent=1 // pred_region
      %37 = dma.done [#allocation6], 64
    $region17: #{tpu_custom_call.1} parent=1 // pred_fallthru
      _
    %v38 = vld [vmem:[#allocation2] sm:$0xff]
    %v39 = vld [vmem:[#allocation2 + $0x8] sm:$0xff]
    %v40 = vld [vmem:[#allocation2 + $0x10] sm:$0xff]
    %v41 = vld [vmem:[#allocation2 + $0x18] sm:$0xff]
    %v42 = vld [vmem:[#allocation2 + $0x20] sm:$0xff]
    %v43 = vld [vmem:[#allocation2 + $0x28] sm:$0xff]
    %v44 = vld [vmem:[#allocation2 + $0x30] sm:$0xff]
    %v45 = vld [vmem:[#allocation2 + $0x38] sm:$0xff]
    %v46 = vld [vmem:[#allocation2 + $0x40] sm:$0xff]
    %v47 = vld [vmem:[#allocation2 + $0x48] sm:$0xff]
    %v48 = vld [vmem:[#allocation2 + $0x50] sm:$0xff]
    %v49 = vld [vmem:[#allocation2 + $0x58] sm:$0xff]
    %v50 = vld [vmem:[#allocation2 + $0x60] sm:$0xff]
    %v51 = vld [vmem:[#allocation2 + $0x68] sm:$0xff]
    %v52 = vld [vmem:[#allocation2 + $0x70] sm:$0xff]
    %v53 = vld [vmem:[#allocation2 + $0x78] sm:$0xff]
    %v54 = vld [vmem:[#allocation5] sm:$0xf]
    %v56 = vlaneseq
    %v57 = vshrl.u32 %v56, 7
    %v58 = vsub.s32 0, %v57
    %v59 = vrot.slane %v54, %v58
    %v60 = vlaneseq
    %v61 = vshrl.u32 %v60, 7
    %v62 = vsub.s32 1, %v61
    %v63 = vrot.slane %v54, %v62
    %v64 = vlaneseq
    %v65 = vshrl.u32 %v64, 7
    %v66 = vsub.s32 2, %v65
    %v67 = vrot.slane %v54, %v66
    %v68 = vlaneseq
    %v69 = vshrl.u32 %v68, 7
    %v70 = vsub.s32 3, %v69
    %v71 = vrot.slane %v54, %v70
    %v76 = vmul.f32 %v38, %v59
    %v77 = vmul.f32 %v39, %v63
    %v78 = vmul.f32 %v40, %v67
    %v79 = vmul.f32 %v41, %v71
    %v80 = vmul.f32 %v42, %v59
    %v81 = vmul.f32 %v43, %v63
    %v82 = vmul.f32 %v44, %v67
    %v83 = vmul.f32 %v45, %v71
    %v84 = vmul.f32 %v46, %v59
    %v85 = vmul.f32 %v47, %v63
    %v86 = vmul.f32 %v48, %v67
    %v87 = vmul.f32 %v49, %v71
    %v88 = vmul.f32 %v50, %v59
    %v89 = vmul.f32 %v51, %v63
    %v90 = vmul.f32 %v52, %v67
    %v91 = vmul.f32 %v53, %v71
    %v92 = vadd.f32 %v76, %v77
    %v93 = vadd.f32 %v92, %v78
    %vm94 = vcmask 506880
    %v95 = vsel %vm94, %v79, 0.0
    %v96 = vadd.f32 %v93, %v95
    %97 = vadd.xlane.f32.xlu0 %v96
    %v98 = vpop.xlane.xlu0 %97
    %v99 = vadd.f32 %v80, %v81
    %v100 = vadd.f32 %v99, %v82
    %v101 = vsel %vm94, %v83, 0.0
    %v102 = vadd.f32 %v100, %v101
    %103 = vadd.xlane.f32.xlu0 %v102
    %v104 = vpop.xlane.xlu0 %103
    %v105 = vadd.f32 %v84, %v85
    %v106 = vadd.f32 %v105, %v86
    %v107 = vsel %vm94, %v87, 0.0
    %v108 = vadd.f32 %v106, %v107
    %109 = vadd.xlane.f32.xlu0 %v108
    %v110 = vpop.xlane.xlu0 %109
    %v111 = vadd.f32 %v88, %v89
    %v112 = vadd.f32 %v111, %v90
    %v113 = vsel %vm94, %v91, 0.0
    %v114 = vadd.f32 %v112, %v113
    %115 = vadd.xlane.f32.xlu0 %v114
    %v116 = vpop.xlane.xlu0 %115
    %v121 = vlaneseq
    %v122 = vand.u32 %v121, 127
    %v123 = vlaneseq
    %v124 = vshrl.u32 %v123, 7
    %v125 = vsub.s32 %v122, %v124
    %v126 = vrot.slane %v98, %v125
    %v127 = vlaneseq
    %v128 = vshrl.u32 %v127, 7
    %v129 = vsub.s32 %v122, %v128
    %v130 = vrot.slane %v104, %v129
    %v131 = vlaneseq
    %v132 = vshrl.u32 %v131, 7
    %v133 = vsub.s32 %v122, %v132
    %v134 = vrot.slane %v110, %v133
    %v135 = vlaneseq
    %v136 = vshrl.u32 %v135, 7
    %v137 = vsub.s32 %v122, %v136
    %v138 = vrot.slane %v116, %v137
    %vm139 = vcmask 1041409
    %v140 = vsel %vm139, %v130, %v126
    %vm141 = vcmask 1042434
    %v142 = vsel %vm141, %v134, %v140
    %vm143 = vcmask 1043459
    %v144 = vsel %vm143, %v138, %v142
    %vm146 = vcmask 60416
    %v147 = vsel %vm146, %v144, -inf
    %148 = vmax.xlane.f32.xlu0 %v147
    %v149 = vpop.xlane.xlu0 %148
    %v151 = vlaneseq
    %v152 = vshrl.u32 %v151, 7
    %v153 = vsub.s32 0, %v152
    %v154 = vrot.slane %v149, %v153
    %v155 = vlaneseq
    %v156 = vshrl.u32 %v155, 7
    %v157 = vsub.s32 1, %v156
    %v158 = vrot.slane %v149, %v157
    %v159 = vlaneseq
    %v160 = vshrl.u32 %v159, 7
    %v161 = vsub.s32 2, %v160
    %v162 = vrot.slane %v149, %v161
    %v163 = vlaneseq
    %v164 = vshrl.u32 %v163, 7
    %v165 = vsub.s32 3, %v164
    %v166 = vrot.slane %v149, %v165
    %v171 = vsub.f32 %v98, %v154
    %v172 = vsub.f32 %v104, %v158
    %v173 = vsub.f32 %v110, %v162
    %v174 = vsub.f32 %v116, %v166
    %v175 = vmul.f32 %v171, 1.442695
    %v176 = vpow.pop %v175
    %v177 = vmul.f32 %v172, 1.442695
    %v178 = vpow.pop %v177
    %v179 = vmul.f32 %v173, 1.442695
    %v180 = vpow.pop %v179
    %v181 = vmul.f32 %v174, 1.442695
    %v182 = vpow.pop %v181
    %187 = vset.pattern.permute.xlu0 0
    %188 = vperm.xlu0 %187, %v176
    %v189 = vpop.permute.xlu0 %188
    %190 = vset.pattern.permute.xlu0 0
    %191 = vperm.xlu0 %190, %v178
    %v192 = vpop.permute.xlu0 %191
    %193 = vset.pattern.permute.xlu0 0
    %194 = vperm.xlu0 %193, %v180
    %v195 = vpop.permute.xlu0 %194
    %196 = vset.pattern.permute.xlu0 0
    %197 = vperm.xlu0 %196, %v182
    %v198 = vpop.permute.xlu0 %197
    %v199 = vlaneseq
    %v200 = vshrl.u32 %v199, 7
    %v201 = vsub.s32 %v122, %v200
    %v202 = vrot.slane %v189, %v201
    %v203 = vlaneseq
    %v204 = vshrl.u32 %v203, 7
    %v205 = vsub.s32 %v122, %v204
    %v206 = vrot.slane %v192, %v205
    %v207 = vlaneseq
    %v208 = vshrl.u32 %v207, 7
    %v209 = vsub.s32 %v122, %v208
    %v210 = vrot.slane %v195, %v209
    %v211 = vlaneseq
    %v212 = vshrl.u32 %v211, 7
    %v213 = vsub.s32 %v122, %v212
    %v214 = vrot.slane %v198, %v213
    %v215 = vsel %vm139, %v206, %v202
    %v216 = vsel %vm141, %v210, %v215
    %v217 = vsel %vm143, %v214, %v216
    %v219 = vsel %vm146, %v217, 0.0
    %220 = vadd.xlane.f32.xlu0 %v219
    %v221 = vpop.xlane.xlu0 %220
    %v222 = vrcp.pop %v221
    %v223 = vmul.f32 %v221, %v222
    %v224 = vsub.f32 2.0, %v223
    %v225 = vmul.f32 %v222, %v224
    %v227 = vlaneseq
    %v228 = vshrl.u32 %v227, 7
    %v229 = vsub.s32 0, %v228
    %v230 = vrot.slane %v225, %v229
    %v231 = vlaneseq
    %v232 = vshrl.u32 %v231, 7
    %v233 = vsub.s32 1, %v232
    %v234 = vrot.slane %v225, %v233
    %v235 = vlaneseq
    %v236 = vshrl.u32 %v235, 7
    %v237 = vsub.s32 2, %v236
    %v238 = vrot.slane %v225, %v237
    %v239 = vlaneseq
    %v240 = vshrl.u32 %v239, 7
    %v241 = vsub.s32 3, %v240
    %v242 = vrot.slane %v225, %v241
    %v247 = vmul.f32 %v176, %v230
    %v248 = vmul.f32 %v178, %v234
    %v249 = vmul.f32 %v180, %v238
    %v250 = vmul.f32 %v182, %v242
    %255 = vset.pattern.permute.xlu0 0
    %256 = vperm.xlu0 %255, %v247
    %v257 = vpop.permute.xlu0 %256
    %258 = vset.pattern.permute.xlu0 0
    %259 = vperm.xlu0 %258, %v248
    %v260 = vpop.permute.xlu0 %259
    %261 = vset.pattern.permute.xlu0 0
    %262 = vperm.xlu0 %261, %v249
    %v263 = vpop.permute.xlu0 %262
    %264 = vset.pattern.permute.xlu0 0
    %265 = vperm.xlu0 %264, %v250
    %v266 = vpop.permute.xlu0 %265
    %v267 = vlaneseq
    %v268 = vshrl.u32 %v267, 7
    %v269 = vsub.s32 %v122, %v268
    %v270 = vrot.slane %v257, %v269
    %v271 = vlaneseq
    %v272 = vshrl.u32 %v271, 7
    %v273 = vsub.s32 %v122, %v272
    %v274 = vrot.slane %v260, %v273
    %v275 = vlaneseq
    %v276 = vshrl.u32 %v275, 7
    %v277 = vsub.s32 %v122, %v276
    %v278 = vrot.slane %v263, %v277
    %v279 = vlaneseq
    %v280 = vshrl.u32 %v279, 7
    %v281 = vsub.s32 %v122, %v280
    %v282 = vrot.slane %v266, %v281
    %v283 = vsel %vm139, %v274, %v270
    %v284 = vsel %vm141, %v278, %v283
    %v285 = vsel %vm143, %v282, %v284
    %287 = vst.msk [vmem:[#allocation7] sm:$0xf] %vm146, %v285
    // Predicated region
    $region18: #{tpu_custom_call.1} parent=1 // pred_check
      _
    $region19: #{tpu_custom_call.1} parent=1 // pred_check_branch
      %289 = sbr.rel (0) target = $region21
    $region20: #{tpu_custom_call.1} parent=1 // pred_region
      %s291 = ssub.s32 64, 64
      %292 = vsyncadd [#allocation4], %s291
      %s294 = sshll.u32 [#allocation7], 4
      %s295 = int_to_ptr.vmem [resolvable:$true] %s294
      %297 = dma.vmem_to_hbm [thread:$0]  %s295, 64, %s2, [#allocation4]
    $region21: #{tpu_custom_call.1} parent=1 // pred_fallthru
      _
    // Predicated region
    $region22: #{tpu_custom_call.1} parent=1 // pred_check
      _
    $region23: #{tpu_custom_call.1} parent=1 // pred_check_branch
      %299 = sbr.rel (0) target = $region25
    $region24: #{tpu_custom_call.1} parent=1 // pred_region
      %300 = dma.done [#allocation4], 64
    $region25: #{tpu_custom_call.1} parent=1 // pred_fallthru
      _
    %301 = vsyncpa [#allocation3], 1
    %302 = vsyncpa [#allocation6], 1
    %303 = vsyncpa [#allocation4], 1

</llo_original>
